<compile_context>
chip_gen: v7x
topology: tpu7x:2x2x1
jax: 0.10.0
libtpu: 0.0.40
codegen_flags: <defaults>
</compile_context>

<pallas_src>
import functools

import jax
import jax.numpy as jnp
from jax.experimental import pallas as pl
from jax.experimental.pallas import tpu as pltpu


def _distill_kl_kernel(ys_ref, yt_ref, part_ref, *, T, inv_batch, valid_b, block_b):
    # Load one (TB, C) tile of each input, promote to f32 for stable math.
    ys = ys_ref[...].astype(jnp.float32) * (1.0 / T)
    yt = yt_ref[...].astype(jnp.float32) * (1.0 / T)

    # Student log-softmax along the class (lane) axis.
    ys_shift = ys - jnp.max(ys, axis=-1, keepdims=True)
    log_p_s = ys_shift - jnp.log(jnp.sum(jnp.exp(ys_shift), axis=-1, keepdims=True))

    # Teacher: shifted exponentials and per-row sums only (no full-size p_t /
    # log_p_t temporaries).
    yt_shift = yt - jnp.max(yt, axis=-1, keepdims=True)
    yt_exp = jnp.exp(yt_shift)
    yt_sum = jnp.sum(yt_exp, axis=-1, keepdims=True)                      # (TB, 1)
    row_term = jnp.sum(yt_exp * (yt_shift - log_p_s), axis=-1, keepdims=True)

    # Per-row KL = row_term / yt_sum - log(yt_sum)   (division on (TB,1) only).
    row_kl = row_term * pl.reciprocal(yt_sum, approx=False) - jnp.log(yt_sum)

    # Mask out batch-padding rows exactly (only needed on ragged batches).
    if valid_b % block_b != 0:
        row0 = pl.program_id(0) * block_b
        row_ids = row0 + jax.lax.broadcasted_iota(jnp.int32, row_kl.shape, 0)
        row_kl = jnp.where(row_ids < valid_b, row_kl, 0.0)

    tile_loss = jnp.sum(row_kl) * (T * T * inv_batch)
    # Lane-dense write of the per-tile partial (whole (1, 8, 128) block).
    part_ref[...] = jnp.broadcast_to(tile_loss, part_ref.shape)


def distill_kl(y_s, y_t, T, *, block_b=None):
    """Pallas implementation of DistillKL.forward. y_s, y_t: (B, C) logits."""
    assert y_s.shape == y_t.shape and y_s.ndim == 2
    B, C = y_s.shape
    itemsize = jnp.dtype(y_s.dtype).itemsize

    # Sublane alignment for the input dtype (8 f32, 16 bf16, 32 int8/fp8).
    align = max(8, 32 // itemsize)

    if block_b is None:
        # Conservative VMEM budget so tiles fit every generation (incl. v7x):
        # 2 inputs x 2 pipeline buffers + ~8 f32-sized temporaries per row.
        budget_bytes = 20 * 1024 * 1024
        per_row_bytes = C * (4 * itemsize + 8 * 4)
        tb = max(align, (budget_bytes // per_row_bytes) // align * align)
        tb = min(tb, 512)
    else:
        tb = max(align, ((block_b + align - 1) // align) * align)

    # Don't tile beyond the (aligned) batch.
    tb = min(tb, ((B + align - 1) // align) * align)

    b_pad = ((B + tb - 1) // tb) * tb
    num_tiles = b_pad // tb
    if b_pad != B:
        pad = b_pad - B
        y_s = jnp.pad(y_s, ((0, pad), (0, 0)))
        y_t = jnp.pad(y_t, ((0, pad), (0, 0)))

    kernel = functools.partial(
        _distill_kl_kernel,
        T=float(T),
        inv_batch=1.0 / float(B),
        valid_b=B,
        block_b=tb,
    )

    partials = pl.pallas_call(
        kernel,
        out_shape=jax.ShapeDtypeStruct((num_tiles, 8, 128), jnp.float32),
        grid=(num_tiles,),
        in_specs=[
            pl.BlockSpec((tb, C), lambda i: (i, 0)),
            pl.BlockSpec((tb, C), lambda i: (i, 0)),
        ],
        out_specs=pl.BlockSpec((1, 8, 128), lambda i: (i, 0, 0)),
        compiler_params=pltpu.CompilerParams(
            dimension_semantics=("parallel",),
            vmem_limit_bytes=32 * 1024 * 1024,
        ),
    )(y_s, y_t)

    return jnp.sum(partials[:, 0, 0])


def _distill_kl_ref(y_s, y_t, T):
    # Pure-JAX reference for validation (f32 math, same as kernel).
    p_s = jax.nn.log_softmax(y_s.astype(jnp.float32) / T, axis=1)
    p_t = jax.nn.softmax(y_t.astype(jnp.float32) / T, axis=1)
    return jnp.sum(p_t * (jnp.log(p_t) - p_s)) * T ** 2 / y_s.shape[0]


if __name__ == "__main__":
    key = jax.random.PRNGKey(0)
    k1, k2, k3, k4 = jax.random.split(key, 4)
    T = 4.0

    # Small case matching the module's (batch, num_classes) logits.
    B, C = 8, 32
    y_s = jax.random.normal(k1, (B, C), dtype=jnp.float32)
    y_t = jax.random.normal(k2, (B, C), dtype=jnp.float32)
    loss = jax.block_until_ready(distill_kl(y_s, y_t, T))
    ref = _distill_kl_ref(y_s, y_t, T)
    assert jnp.allclose(loss, ref, rtol=1e-5, atol=1e-5), (loss, ref)

    # Multi-tile path: bf16 inputs, batch not divisible by the tile -> exercises
    # the grid, batch padding + masking, and the bf16->f32 promotion.
    B2, C2 = 20, 256
    y_s2 = jax.random.normal(k3, (B2, C2), dtype=jnp.bfloat16)
    y_t2 = jax.random.normal(k4, (B2, C2), dtype=jnp.bfloat16)
    loss2 = jax.block_until_ready(distill_kl(y_s2, y_t2, T, block_b=8))
    ref2 = _distill_kl_ref(y_s2, y_t2, T)
    assert jnp.allclose(loss2, ref2, rtol=1e-4, atol=1e-4), (loss2, ref2)

    print("KERNEL_OK")
</pallas_src>

<mosaic_0001>
module attributes {stable_mosaic.version = 11 : i64} {
  func.func @_distill_kl_kernel(%arg0: i32, %arg1: memref<8x32xf32, #tpu.memory_space<vmem>>, %arg2: memref<8x32xf32, #tpu.memory_space<vmem>>, %arg3: memref<1x8x128xf32, #tpu.memory_space<vmem>>) attributes {dimension_semantics = [#tpu.dimension_semantics<parallel>], iteration_bounds = array<i64: 1>, scalar_prefetch = 0 : i64, scratch_operands = 0 : i64, tpu.core_type = #tpu.core_type<tc>, window_params = [{transform_indices = @transform_0, window_bounds = array<i64: 8, 32>}, {transform_indices = @transform_1, window_bounds = array<i64: 8, 32>}, {transform_indices = @transform_2, window_bounds = array<i64: 1, 8, 128>}]} {
    %c0 = arith.constant 0 : index
    %c0_0 = arith.constant 0 : index
    %0 = vector.load %arg1[%c0, %c0_0] : memref<8x32xf32, #tpu.memory_space<vmem>>, vector<8x32xf32>
    %cst = arith.constant 2.500000e-01 : f32
    %1 = vector.broadcast %cst : f32 to vector<8x32xf32>
    %2 = arith.mulf %0, %1 : vector<8x32xf32>
    %c0_1 = arith.constant 0 : index
    %c0_2 = arith.constant 0 : index
    %3 = vector.load %arg2[%c0_1, %c0_2] : memref<8x32xf32, #tpu.memory_space<vmem>>, vector<8x32xf32>
    %cst_3 = arith.constant 2.500000e-01 : f32
    %4 = vector.broadcast %cst_3 : f32 to vector<8x32xf32>
    %5 = arith.mulf %3, %4 : vector<8x32xf32>
    %cst_4 = arith.constant dense<0xFF800000> : vector<8xf32>
    %6 = vector.multi_reduction <maximumf>, %2, %cst_4 [1] : vector<8x32xf32> to vector<8xf32>
    %7 = vector.shape_cast %6 : vector<8xf32> to vector<8x1xf32>
    %8 = vector.broadcast %7 : vector<8x1xf32> to vector<8x32xf32>
    %9 = arith.subf %2, %8 : vector<8x32xf32>
    %10 = math.exp %9 : vector<8x32xf32>
    %cst_5 = arith.constant dense<0.000000e+00> : vector<8xf32>
    %11 = vector.multi_reduction <add>, %10, %cst_5 [1] : vector<8x32xf32> to vector<8xf32>
    %12 = vector.shape_cast %11 : vector<8xf32> to vector<8x1xf32>
    %13 = math.log %12 : vector<8x1xf32>
    %14 = vector.broadcast %13 : vector<8x1xf32> to vector<8x32xf32>
    %15 = arith.subf %9, %14 : vector<8x32xf32>
    %cst_6 = arith.constant dense<0xFF800000> : vector<8xf32>
    %16 = vector.multi_reduction <maximumf>, %5, %cst_6 [1] : vector<8x32xf32> to vector<8xf32>
    %17 = vector.shape_cast %16 : vector<8xf32> to vector<8x1xf32>
    %18 = vector.broadcast %17 : vector<8x1xf32> to vector<8x32xf32>
    %19 = arith.subf %5, %18 : vector<8x32xf32>
    %20 = math.exp %19 : vector<8x32xf32>
    %cst_7 = arith.constant dense<0.000000e+00> : vector<8xf32>
    %21 = vector.multi_reduction <add>, %20, %cst_7 [1] : vector<8x32xf32> to vector<8xf32>
    %22 = vector.shape_cast %21 : vector<8xf32> to vector<8x1xf32>
    %23 = arith.subf %19, %15 : vector<8x32xf32>
    %24 = arith.mulf %20, %23 : vector<8x32xf32>
    %cst_8 = arith.constant dense<0.000000e+00> : vector<8xf32>
    %25 = vector.multi_reduction <add>, %24, %cst_8 [1] : vector<8x32xf32> to vector<8xf32>
    %26 = vector.shape_cast %25 : vector<8xf32> to vector<8x1xf32>
    %27 = tpu.reciprocal %22 : vector<8x1xf32> -> vector<8x1xf32>
    %28 = arith.mulf %26, %27 : vector<8x1xf32>
    %29 = math.log %22 : vector<8x1xf32>
    %30 = arith.subf %28, %29 : vector<8x1xf32>
    %31 = vector.shape_cast %30 : vector<8x1xf32> to vector<1x8x1xf32>
    %cst_9 = arith.constant dense<0.000000e+00> : vector<1xf32>
    %32 = vector.multi_reduction <add>, %31, %cst_9 [1, 2] : vector<1x8x1xf32> to vector<1xf32>
    %33 = vector.shape_cast %32 : vector<1xf32> to vector<1x1x1xf32>
    %34 = vector.extract %33[0, 0, 0] : f32 from vector<1x1x1xf32>
    %cst_10 = arith.constant 2.000000e+00 : f32
    %35 = arith.mulf %34, %cst_10 : f32
    %36 = vector.broadcast %35 : f32 to vector<1x8x128xf32>
    %c0_11 = arith.constant 0 : index
    %c0_12 = arith.constant 0 : index
    %c0_13 = arith.constant 0 : index
    %37 = vector.load %arg3[%c0_11, %c0_12, %c0_13] : memref<1x8x128xf32, #tpu.memory_space<vmem>>, vector<1x8x128xf32>
    tpu.vector_store %arg3[%c0_11, %c0_12, %c0_13], %36 {strides = array<i32>} : memref<1x8x128xf32, #tpu.memory_space<vmem>>, vector<1x8x128xf32>,
    return
  }
  func.func @transform_0(%arg0: i32) -> (i32, i32) {
    %c0_i32 = arith.constant 0 : i32
    %c0_i32_0 = arith.constant 0 : i32
    return %arg0, %c0_i32 : i32, i32
  }
  func.func @transform_1(%arg0: i32) -> (i32, i32) {
    %c0_i32 = arith.constant 0 : i32
    %c0_i32_0 = arith.constant 0 : i32
    return %arg0, %c0_i32 : i32, i32
  }
  func.func @transform_2(%arg0: i32) -> (i32, i32, i32) {
    %c0_i32 = arith.constant 0 : i32
    %c0_i32_0 = arith.constant 0 : i32
    %c0_i32_1 = arith.constant 0 : i32
    return %arg0, %c0_i32, %c0_i32_0 : i32, i32, i32
  }
}

</mosaic_0001>

<llo_original>
// kernel: tpu_custom_call.1
$region0: #{tpu_custom_call.1}
  #allocation0 [shape = 'u32[]', space=smem, size = 0x4, offset = 0x4, fixed_abs, tag = 'smem constant byte address 0x4 - core index']
  #allocation1 [shape = 'u32[144,128]{1,0:T(1,128)}', space=vmem, size = 0x12000, scoped, tag = 'internal scratch']
  %s0 = inlined_call_operand.hbm [shape: f32[8,32], index: 0, kind: input, shape index: {}]
  %s1 = inlined_call_operand.hbm [shape: f32[8,32], index: 1, kind: input, shape index: {}]
  %s2 = inlined_call_operand.hbm [shape: f32[1,8,128], index: 2, kind: output, shape index: {}]
  %s3 = sld [smem:[#allocation0]]
  $region26: #{tpu_custom_call.1} parent=0
    _
  %s5 = ssub.s32 1, %s3
  %s6 = scalar_select 0, %s5, %s3
  $region1: #{tpu_custom_call.1} parent=0
    #allocation2 [shape = 'u8[4096]{0}', space=vmem, size = 0x1000, scoped, tag = 'input window, operand 0, single buffered']
    #allocation3 [shape = 's32[1]{0}', space=sflag, size = 0x4, scoped, tag = 'scoped memory for tpu_custom_call.1']
    #allocation4 [shape = 's32[1]{0}', space=sflag, size = 0x4, scoped, tag = 'scoped memory for tpu_custom_call.1']
    #allocation5 [shape = 'u8[4096]{0}', space=vmem, size = 0x1000, scoped, tag = 'input window, operand 1, single buffered']
    #allocation6 [shape = 's32[1]{0}', space=sflag, size = 0x4, scoped, tag = 'scoped memory for tpu_custom_call.1']
    #allocation7 [shape = 'u8[4096]{0}', space=vmem, size = 0x1000, scoped, tag = 'output window, operand 0, single buffered']
    %7 = vsyncpa [#allocation3], 0
    %8 = vsyncpa [#allocation6], 0
    %9 = vsyncpa [#allocation4], 0
    // Predicated region
    $region2: #{tpu_custom_call.1} parent=1 // pred_check
      _
    $region3: #{tpu_custom_call.1} parent=1 // pred_check_branch
      %11 = sbr.rel (0) target = $region5
    $region4: #{tpu_custom_call.1} parent=1 // pred_region
      %s13 = ssub.s32 128, 128
      %14 = vsyncadd [#allocation3], %s13
      %s16 = sshll.u32 [#allocation2], 4
      %s17 = int_to_ptr.vmem [resolvable:$true] %s16
      %19 = dma.hbm_to_vmem [thread:$0]  %s0, 128, %s17, [#allocation3]
    $region5: #{tpu_custom_call.1} parent=1 // pred_fallthru
      _
    // Predicated region
    $region6: #{tpu_custom_call.1} parent=1 // pred_check
      _
    $region7: #{tpu_custom_call.1} parent=1 // pred_check_branch
      %21 = sbr.rel (0) target = $region9
    $region8: #{tpu_custom_call.1} parent=1 // pred_region
      %s23 = ssub.s32 128, 128
      %24 = vsyncadd [#allocation6], %s23
      %s26 = sshll.u32 [#allocation5], 4
      %s27 = int_to_ptr.vmem [resolvable:$true] %s26
      %29 = dma.hbm_to_vmem [thread:$0]  %s1, 128, %s27, [#allocation6]
    $region9: #{tpu_custom_call.1} parent=1 // pred_fallthru
      _
    // Predicated region
    $region10: #{tpu_custom_call.1} parent=1 // pred_check
      _
    $region11: #{tpu_custom_call.1} parent=1 // pred_check_branch
      %31 = sbr.rel (0) target = $region13
    $region12: #{tpu_custom_call.1} parent=1 // pred_region
      %32 = dma.done [#allocation3], 128
    $region13: #{tpu_custom_call.1} parent=1 // pred_fallthru
      _
    // Predicated region
    $region14: #{tpu_custom_call.1} parent=1 // pred_check
      _
    $region15: #{tpu_custom_call.1} parent=1 // pred_check_branch
      %34 = sbr.rel (0) target = $region17
    $region16: #{tpu_custom_call.1} parent=1 // pred_region
      %35 = dma.done [#allocation6], 128
    $region17: #{tpu_custom_call.1} parent=1 // pred_fallthru
      _
    %v36 = vld [vmem:[#allocation2] sm:$0xff]
    %v37 = vmul.f32 %v36, 0.25
    %v38 = vld [vmem:[#allocation5] sm:$0xff]
    %v39 = vmul.f32 %v38, 0.25
    %vm40 = vcmask 261120
    %v41 = vsel %vm40, %v37, -inf
    %42 = vmax.xlane.f32.xlu0 %v41
    %v43 = vpop.xlane.xlu0 %42
    %v44 = vsub.f32 %v37, %v43
    %v45 = vmul.f32 %v44, 1.442695
    %v46 = vpow.pop %v45
    %v47 = vsel %vm40, %v46, 0.0
    %48 = vadd.xlane.f32.xlu0 %v47
    %v49 = vpop.xlane.xlu0 %48
    %v50 = vlog2.pop %v49
    %v51 = vmul.f32 %v50, 0.6931472
    %v52 = vsub.f32 %v44, %v51
    %v53 = vsel %vm40, %v39, -inf
    %54 = vmax.xlane.f32.xlu0 %v53
    %v55 = vpop.xlane.xlu0 %54
    %v56 = vsub.f32 %v39, %v55
    %v57 = vmul.f32 %v56, 1.442695
    %v58 = vpow.pop %v57
    %v59 = vsel %vm40, %v58, 0.0
    %60 = vadd.xlane.f32.xlu0 %v59
    %v61 = vpop.xlane.xlu0 %60
    %v62 = vsub.f32 %v56, %v52
    %v63 = vmul.f32 %v58, %v62
    %v64 = vsel %vm40, %v63, 0.0
    %65 = vadd.xlane.f32.xlu0 %v64
    %v66 = vpop.xlane.xlu0 %65
    %v67 = vrcp.pop %v61
    %v68 = vmul.f32 %v66, %v67
    %v69 = vlog2.pop %v61
    %v70 = vmul.f32 %v69, 0.6931472
    %v71 = vsub.f32 %v68, %v70
    %vm72 = vcmask 7168
    %v73 = vsel %vm72, %v71, 0.0
    %74 = vadd.xlane.f32.xlu0 %v73
    %v75 = vpop.xlane.xlu0 %74
    %v76 = vrot.slane %v75, 4
    %v77 = vadd.f32 %v75, %v76
    %v78 = vrot.slane %v77, 2
    %v79 = vadd.f32 %v77, %v78
    %v80 = vrot.slane %v79, 1
    %v81 = vadd.f32 %v79, %v80
    %s82 = vtos %v81
    %s83 = smul.f32 %s82, 2.0
    %v84 = vstv %s83
    %85 = vst [vmem:[#allocation7] sm:$0xff] %v84
    // Predicated region
    $region18: #{tpu_custom_call.1} parent=1 // pred_check
      _
    $region19: #{tpu_custom_call.1} parent=1 // pred_check_branch
      %87 = sbr.rel (0) target = $region21
    $region20: #{tpu_custom_call.1} parent=1 // pred_region
      %s89 = ssub.s32 128, 128
      %90 = vsyncadd [#allocation4], %s89
      %s92 = sshll.u32 [#allocation7], 4
      %s93 = int_to_ptr.vmem [resolvable:$true] %s92
      %95 = dma.vmem_to_hbm [thread:$0]  %s93, 128, %s2, [#allocation4]
    $region21: #{tpu_custom_call.1} parent=1 // pred_fallthru
      _
    // Predicated region
    $region22: #{tpu_custom_call.1} parent=1 // pred_check
      _
    $region23: #{tpu_custom_call.1} parent=1 // pred_check_branch
      %97 = sbr.rel (0) target = $region25
    $region24: #{tpu_custom_call.1} parent=1 // pred_region
      %98 = dma.done [#allocation4], 128
    $region25: #{tpu_custom_call.1} parent=1 // pred_fallthru
      _
    %99 = vsyncpa [#allocation3], 1
    %100 = vsyncpa [#allocation6], 1
    %101 = vsyncpa [#allocation4], 1

</llo_original>
